<compile_context>
chip_gen: v6e
topology: v6e:2x2x1
jax: 0.10.0
libtpu: 0.0.40
codegen_flags: <defaults>
</compile_context>

<pallas_src>
import jax
import jax.numpy as jnp
from jax.experimental import pallas as pl
from jax.experimental.pallas import tpu as pltpu


def attention_kernel(enc_ref, wv_ref, bias_ref, mask_ref, ctx_ref, attn_ref):
    # enc is streamed from HBM in bf16 (the dominant DMA); math is f32.
    enc = enc_ref[...].astype(jnp.float32)                     # (TB, L, 2H)
    wv = wv_ref[...].astype(jnp.float32)                       # (1, 1, 2H), pre-shaped
    bias = bias_ref[...]                                       # (TB, 1)
    mask = mask_ref[...]                                       # (TB, L)

    # score[b, l] = <enc[b, l, :], wv> + bias[b]   (folded Wh/Ws/v projection)
    score = jnp.sum(enc * wv, axis=-1) + bias                  # (TB, L)

    # Masked, numerically-stable softmax fused with the padding-mask
    # renormalization (exp*mask normalized once == softmax -> *mask -> /sum).
    # Masking before the max keeps a dominant padded position from
    # underflowing every valid term; fully-padded rows come out as exact 0s.
    score = jnp.where(mask > 0.0, score, jnp.float32(-1e30))
    m = jnp.max(score, axis=-1, keepdims=True)                 # (TB, 1)
    e = jnp.exp(score - m) * mask                              # (TB, L)
    denom = jnp.maximum(jnp.sum(e, axis=-1, keepdims=True), jnp.float32(1e-30))
    attn = e / denom                                           # (TB, L)

    # context[b, :] = sum_l attn[b, l] * enc[b, l, :]  — contract L on the MXU
    # instead of a broadcast-multiply + sublane reduce.
    ctx = jnp.einsum("bql,bld->bqd", attn[:, None, :], enc,
                     preferred_element_type=jnp.float32)[:, 0, :]   # (TB, 2H)

    attn_ref[...] = attn.astype(attn_ref.dtype)
    ctx_ref[...] = ctx.astype(ctx_ref.dtype)


def _tpu_vmem_capacity_bytes():
    """Physical VMEM of the current part; conservative fallback (v7x per-TC)."""
    try:
        cap = getattr(pltpu.get_tpu_info(), "vmem_capacity_bytes", None)
        if cap:
            return int(cap)
    except Exception:
        pass
    return 64 << 20


def _plan_batch_tiling(B, L, D2, enc_itemsize, budget_bytes):
    """Return (TB rows per grid step, padded batch size).

    Keeps TB a multiple of 8 whenever TB < padded B (sublane alignment of the
    2-D mask/attn/ctx tiles), targets the VMEM budget for the dominant enc
    tile, and gives the grid >= 2 steps when the batch allows it so both of
    v7x's TensorCores get work (the extra ~0.35 us step is noise on 1-TC chips).
    """
    row_bytes = L * D2 * enc_itemsize + (2 * L + D2 + 1) * 4
    rows_fit = max(1, int(budget_bytes // row_bytes))
    if B < 16 and rows_fit >= B:
        return B, B                              # tiny batch: one full-extent step
    b_pad = -(-B // 8) * 8
    tb = min(rows_fit, max(8, b_pad // 2))       # >= 2 steps when possible
    tb = max(8, (tb // 8) * 8)
    b_pad = -(-B // tb) * tb                     # pad so every step is full
    return tb, b_pad


def attention_forward(decoder_states, encoder_output, x_padding_masks, params,
                      coverage_vector=None, stream_dtype=jnp.bfloat16):
    """decoder_states = (h_dec, c_dec), each (1, B, H);
       encoder_output (B, L, 2H); x_padding_masks (B, L)."""
    h_dec, c_dec = decoder_states
    B, L, D2 = encoder_output.shape

    # s_t = cat([h, c], -1).transpose(0, 1) -> (B, 2H); the per-position
    # expand_as in the source is position-independent, so it folds away.
    s_t = jnp.concatenate([h_dec, c_dec], axis=-1)[0].astype(jnp.float32)     # (B, 2H)

    # Algebraic fold of the linear layers (no nonlinearity between them):
    #   score = v(Wh(enc) + Ws(s_t) + b) = enc @ (Wh^T v^T) + (s_t Ws^T + b) v^T
    wh = params["Wh_w"].astype(jnp.float32)
    ws = params["Ws_w"].astype(jnp.float32)
    wsb = params["Ws_b"].astype(jnp.float32)
    vw = params["v_w"].astype(jnp.float32)
    wv = (wh.T @ vw.T).reshape(1, 1, D2)                                      # (1, 1, 2H)
    bias = (s_t @ ws.T + wsb) @ vw.T                                          # (B, 1)

    mask = x_padding_masks.astype(jnp.float32)                                # (B, L)
    enc = encoder_output.astype(stream_dtype)      # bf16 stream: halves dominant DMA

    cap = _tpu_vmem_capacity_bytes()
    itemsize = jnp.dtype(stream_dtype).itemsize
    TB, B_pad = _plan_batch_tiling(B, L, D2, itemsize, cap // 5)
    if B_pad != B:
        pad = B_pad - B
        enc = jnp.pad(enc, ((0, pad), (0, 0), (0, 0)))
        mask = jnp.pad(mask, ((0, pad), (0, 0)))     # zero mask -> attn/ctx = 0
        bias = jnp.pad(bias, ((0, pad), (0, 0)))

    # Double-buffered per-step footprint (enc dominates) -> explicit VMEM
    # limit, so the same plan compiles on v5e's 16 MiB scoped default and
    # stays inside v7x's 64 MiB physical VMEM.
    footprint = 2 * TB * (L * D2 * itemsize + (2 * L + D2 + 1) * 4) + 2 * D2 * 4
    vmem_limit = int(min(cap * 7 // 8, max(2 * footprint, 32 << 20)))

    grid = (B_pad // TB,)
    ctx, attn = pl.pallas_call(
        attention_kernel,
        out_shape=(
            jax.ShapeDtypeStruct((B_pad, D2), jnp.float32),
            jax.ShapeDtypeStruct((B_pad, L), jnp.float32),
        ),
        grid=grid,
        in_specs=[
            pl.BlockSpec((TB, L, D2), lambda b: (b, 0, 0)),   # encoder_output (bf16)
            pl.BlockSpec((1, 1, D2), lambda b: (0, 0, 0)),    # folded Wh^T v^T vector
            pl.BlockSpec((TB, 1), lambda b: (b, 0)),          # folded decoder bias
            pl.BlockSpec((TB, L), lambda b: (b, 0)),          # padding mask
        ],
        out_specs=(
            pl.BlockSpec((TB, D2), lambda b: (b, 0)),         # context (lane-dense)
            pl.BlockSpec((TB, L), lambda b: (b, 0)),          # attn weights (lane-dense)
        ),
        compiler_params=pltpu.CompilerParams(
            dimension_semantics=("parallel",),
            vmem_limit_bytes=vmem_limit),
    )(enc, wv, bias, mask)

    if B_pad != B:
        ctx, attn = ctx[:B], attn[:B]
    return ctx, attn, coverage_vector


def attention_reference(decoder_states, encoder_output, x_padding_masks, params):
    """Pure-JAX reference (unfused) of the same semantics, for validation."""
    h_dec, c_dec = decoder_states
    s_t = jnp.transpose(jnp.concatenate([h_dec, c_dec], axis=-1), (1, 0, 2))  # (B,1,2H)
    dec_feat = s_t @ params["Ws_w"].T + params["Ws_b"]
    enc_feat = encoder_output @ params["Wh_w"].T
    score = (enc_feat + dec_feat) @ params["v_w"].T                           # (B,L,1)
    attn = jax.nn.softmax(score, axis=1)[:, :, 0]                             # (B,L)
    attn = attn * x_padding_masks
    attn = attn / jnp.sum(attn, axis=1, keepdims=True)
    ctx = jnp.einsum("bl,bld->bd", attn, encoder_output)
    return ctx, attn


if __name__ == "__main__":
    key = jax.random.PRNGKey(0)

    def make_case(B, H, L, case_key):
        D2 = 2 * H
        k_wh, k_ws, k_wsb, k_v, k_h, k_c, k_e, k_len = jax.random.split(case_key, 8)
        # PyTorch Linear stores weight as (out, in).
        params = {
            "Wh_w": 0.1 * jax.random.normal(k_wh, (D2, D2), jnp.float32),   # bias=False
            "Ws_w": 0.1 * jax.random.normal(k_ws, (D2, D2), jnp.float32),
            "Ws_b": 0.1 * jax.random.normal(k_wsb, (D2,), jnp.float32),
            "v_w": 0.1 * jax.random.normal(k_v, (1, D2), jnp.float32),      # bias=False
        }
        h_dec = jax.random.normal(k_h, (1, B, H), jnp.float32)
        c_dec = jax.random.normal(k_c, (1, B, H), jnp.float32)
        enc = jax.random.normal(k_e, (B, L, D2), jnp.float32)
        lens = jax.random.randint(k_len, (B,), 1, L + 1)
        mask = (jnp.arange(L)[None, :] < lens[:, None]).astype(jnp.float32)
        return params, h_dec, c_dec, enc, mask

    def run_case(B, H, L, case_key):
        params, h_dec, c_dec, enc, mask = make_case(B, H, L, case_key)
        ctx, attn, cov = attention_forward((h_dec, c_dec), enc, mask, params)
        jax.block_until_ready((ctx, attn))
        assert cov is None
        assert ctx.shape == (B, 2 * H) and attn.shape == (B, L)

        # Kernel streams enc as bf16: compare tightly against a bf16-matched
        # reference and loosely against the pure-f32 reference.
        enc_bf = enc.astype(jnp.bfloat16).astype(jnp.float32)
        ctx_b, attn_b = attention_reference((h_dec, c_dec), enc_bf, mask, params)
        ctx_f, attn_f = attention_reference((h_dec, c_dec), enc, mask, params)
        assert jnp.allclose(attn, attn_b, rtol=1e-4, atol=1e-5)
        assert jnp.allclose(ctx, ctx_b, rtol=1e-4, atol=1e-4)
        assert jnp.allclose(attn, attn_f, rtol=3e-2, atol=3e-3)
        assert jnp.allclose(ctx, ctx_f, rtol=3e-2, atol=3e-2)
        # attention rows sum to 1 over valid tokens and are zero on padding
        assert jnp.allclose(jnp.sum(attn, axis=-1), jnp.ones((B,)), atol=1e-5)
        assert jnp.allclose(attn * (1.0 - mask), 0.0, atol=1e-7)

    k1, k2 = jax.random.split(key)
    run_case(B=2, H=16, L=8, case_key=k1)     # tiny: whole batch in one grid step
    run_case(B=20, H=64, L=128, case_key=k2)  # exercises TB=8 tiling + batch padding
    print("KERNEL_OK")
</pallas_src>

<mosaic_0001>
module attributes {stable_mosaic.version = 11 : i64} {
  func.func @attention_kernel(%arg0: i32, %arg1: memref<2x8x32xbf16, #tpu.memory_space<vmem>>, %arg2: memref<1x1x32xf32, #tpu.memory_space<vmem>>, %arg3: memref<2x1xf32, #tpu.memory_space<vmem>>, %arg4: memref<2x8xf32, #tpu.memory_space<vmem>>, %arg5: memref<2x32xf32, #tpu.memory_space<vmem>>, %arg6: memref<2x8xf32, #tpu.memory_space<vmem>>) attributes {dimension_semantics = [#tpu.dimension_semantics<parallel>], iteration_bounds = array<i64: 1>, scalar_prefetch = 0 : i64, scratch_operands = 0 : i64, tpu.core_type = #tpu.core_type<tc>, window_params = [{transform_indices = @transform_0, window_bounds = array<i64: 2, 8, 32>}, {pipeline_mode = #tpu.pipeline_mode<synchronous>, transform_indices = @transform_1, window_bounds = array<i64: 1, 1, 32>}, {transform_indices = @transform_2, window_bounds = array<i64: 2, 1>}, {transform_indices = @transform_3, window_bounds = array<i64: 2, 8>}, {transform_indices = @transform_4, window_bounds = array<i64: 2, 32>}, {transform_indices = @transform_5, window_bounds = array<i64: 2, 8>}]} {
    %c0 = arith.constant 0 : index
    %c0_0 = arith.constant 0 : index
    %c0_1 = arith.constant 0 : index
    %0 = vector.load %arg1[%c0, %c0_0, %c0_1] : memref<2x8x32xbf16, #tpu.memory_space<vmem>>, vector<2x8x32xbf16>
    %1 = arith.extf %0 : vector<2x8x32xbf16> to vector<2x8x32xf32>
    %c0_2 = arith.constant 0 : index
    %c0_3 = arith.constant 0 : index
    %c0_4 = arith.constant 0 : index
    %2 = vector.load %arg2[%c0_2, %c0_3, %c0_4] : memref<1x1x32xf32, #tpu.memory_space<vmem>>, vector<1x1x32xf32>
    %c0_5 = arith.constant 0 : index
    %c0_6 = arith.constant 0 : index
    %3 = vector.load %arg3[%c0_5, %c0_6] : memref<2x1xf32, #tpu.memory_space<vmem>>, vector<2x1xf32>
    %c0_7 = arith.constant 0 : index
    %c0_8 = arith.constant 0 : index
    %4 = vector.load %arg4[%c0_7, %c0_8] : memref<2x8xf32, #tpu.memory_space<vmem>>, vector<2x8xf32>
    %5 = vector.broadcast %2 : vector<1x1x32xf32> to vector<2x8x32xf32>
    %6 = arith.mulf %1, %5 : vector<2x8x32xf32>
    %cst = arith.constant dense<0.000000e+00> : vector<2x8xf32>
    %7 = vector.multi_reduction <add>, %6, %cst [2] : vector<2x8x32xf32> to vector<2x8xf32>
    %8 = vector.broadcast %3 : vector<2x1xf32> to vector<2x8xf32>
    %9 = arith.addf %7, %8 : vector<2x8xf32>
    %cst_9 = arith.constant 0.000000e+00 : f32
    %10 = vector.broadcast %cst_9 : f32 to vector<2x8xf32>
    %11 = arith.cmpf ogt, %4, %10 : vector<2x8xf32>
    %cst_10 = arith.constant -1.000000e+30 : f32
    %12 = vector.broadcast %cst_10 : f32 to vector<2x8xf32>
    %13 = arith.select %11, %9, %12 : vector<2x8xi1>, vector<2x8xf32>
    %cst_11 = arith.constant dense<0xFF800000> : vector<2xf32>
    %14 = vector.multi_reduction <maximumf>, %13, %cst_11 [1] : vector<2x8xf32> to vector<2xf32>
    %15 = vector.shape_cast %14 : vector<2xf32> to vector<2x1xf32>
    %16 = vector.broadcast %15 : vector<2x1xf32> to vector<2x8xf32>
    %17 = arith.subf %13, %16 : vector<2x8xf32>
    %18 = math.exp %17 : vector<2x8xf32>
    %19 = arith.mulf %18, %4 : vector<2x8xf32>
    %cst_12 = arith.constant dense<0.000000e+00> : vector<2xf32>
    %20 = vector.multi_reduction <add>, %19, %cst_12 [1] : vector<2x8xf32> to vector<2xf32>
    %21 = vector.shape_cast %20 : vector<2xf32> to vector<2x1xf32>
    %cst_13 = arith.constant 1.000000e-30 : f32
    %22 = vector.broadcast %cst_13 : f32 to vector<2x1xf32>
    %23 = arith.maximumf %21, %22 : vector<2x1xf32>
    %24 = vector.broadcast %23 : vector<2x1xf32> to vector<2x8xf32>
    %25 = arith.divf %19, %24 : vector<2x8xf32>
    %26 = vector.shape_cast %25 : vector<2x8xf32> to vector<2x1x8xf32>
    "tpu.trace_start"() <{level = 10 : i32, message = "bql,bld->bqd"}> : () -> ()
    %cst_14 = arith.constant dense<0.000000e+00> : vector<2x1x32xf32>
    %27 = tpu.matmul %26, %1, %cst_14 {dimension_numbers = #tpu.dot_dimension_numbers<[2], [1], [1], [2], [0, 0, 0, 1, 1, 2], [0], [0]>} : vector<2x1x8xf32>, vector<2x8x32xf32>, vector<2x1x32xf32> -> vector<2x1x32xf32>
    "tpu.trace_stop"() : () -> ()
    %28 = vector.shape_cast %27 : vector<2x1x32xf32> to vector<2x32xf32>
    %c0_15 = arith.constant 0 : index
    %c0_16 = arith.constant 0 : index
    %29 = vector.load %arg6[%c0_15, %c0_16] : memref<2x8xf32, #tpu.memory_space<vmem>>, vector<2x8xf32>
    tpu.vector_store %arg6[%c0_15, %c0_16], %25 {strides = array<i32>} : memref<2x8xf32, #tpu.memory_space<vmem>>, vector<2x8xf32>,
    %c0_17 = arith.constant 0 : index
    %c0_18 = arith.constant 0 : index
    %30 = vector.load %arg5[%c0_17, %c0_18] : memref<2x32xf32, #tpu.memory_space<vmem>>, vector<2x32xf32>
    tpu.vector_store %arg5[%c0_17, %c0_18], %28 {strides = array<i32>} : memref<2x32xf32, #tpu.memory_space<vmem>>, vector<2x32xf32>,
    return
  }
  func.func @transform_0(%arg0: i32) -> (i32, i32, i32) {
    %c0_i32 = arith.constant 0 : i32
    %c0_i32_0 = arith.constant 0 : i32
    %c0_i32_1 = arith.constant 0 : i32
    return %arg0, %c0_i32, %c0_i32_0 : i32, i32, i32
  }
  func.func @transform_1(%arg0: i32) -> (i32, i32, i32) {
    %c0_i32 = arith.constant 0 : i32
    %c0_i32_0 = arith.constant 0 : i32
    %c0_i32_1 = arith.constant 0 : i32
    %c0_i32_2 = arith.constant 0 : i32
    return %c0_i32, %c0_i32_0, %c0_i32_1 : i32, i32, i32
  }
  func.func @transform_2(%arg0: i32) -> (i32, i32) {
    %c0_i32 = arith.constant 0 : i32
    %c0_i32_0 = arith.constant 0 : i32
    return %arg0, %c0_i32 : i32, i32
  }
  func.func @transform_3(%arg0: i32) -> (i32, i32) {
    %c0_i32 = arith.constant 0 : i32
    %c0_i32_0 = arith.constant 0 : i32
    return %arg0, %c0_i32 : i32, i32
  }
  func.func @transform_4(%arg0: i32) -> (i32, i32) {
    %c0_i32 = arith.constant 0 : i32
    %c0_i32_0 = arith.constant 0 : i32
    return %arg0, %c0_i32 : i32, i32
  }
  func.func @transform_5(%arg0: i32) -> (i32, i32) {
    %c0_i32 = arith.constant 0 : i32
    %c0_i32_0 = arith.constant 0 : i32
    return %arg0, %c0_i32 : i32, i32
  }
}

</mosaic_0001>

<llo_original>
// kernel: tpu_custom_call.1
$region0: #{tpu_custom_call.1}
  #allocation0 [shape = 'u32[]', space=smem, size = 0x4, offset = 0x4, fixed_abs, tag = 'smem constant byte address 0x4 - core index']
  #allocation1 [shape = 'u32[144,128]{1,0:T(1,128)}', space=vmem, size = 0x12000, scoped, tag = 'internal scratch']
  %s0 = inlined_call_operand.hbm [shape: bf16[2,8,32], index: 0, kind: input, shape index: {}]
  %s1 = inlined_call_operand.vmem [shape: f32[1,1,32], index: 1, kind: input, shape index: {}]
  %s2 = inlined_call_operand.vmem [shape: f32[2,1], index: 2, kind: input, shape index: {}]
  %s3 = inlined_call_operand.vmem [shape: f32[2,8], index: 3, kind: input, shape index: {}]
  %s4 = inlined_call_operand.hbm [shape: f32[2,32], index: 4, kind: output, shape index: {0}]
  %s5 = inlined_call_operand.hbm [shape: f32[2,8], index: 5, kind: output, shape index: {1}]
  %6 = xla_tuple %s4, %s5
  %s7 = sld [smem:[#allocation0]]
  $region38: #{tpu_custom_call.1} parent=0
    _
  %s9 = ssub.s32 1, %s7
  %s10 = scalar_select 0, %s9, %s7
  $region1: #{tpu_custom_call.1} parent=0
    #allocation2 [shape = 'u8[4096]{0}', space=vmem, size = 0x1000, scoped, tag = 'input window, operand 0, single buffered']
    #allocation3 [shape = 's32[1]{0}', space=sflag, size = 0x4, scoped, tag = 'scoped memory for tpu_custom_call.1']
    #allocation4 [shape = 's32[1]{0}', space=sflag, size = 0x4, scoped, tag = 'scoped memory for tpu_custom_call.1']
    #allocation5 [shape = 'u8[1024]{0}', space=vmem, size = 0x400, scoped, tag = 'output window, operand 0, single buffered']
    #allocation6 [shape = 'u8[1024]{0}', space=vmem, size = 0x400, scoped, tag = 'output window, operand 1, single buffered']
    #allocation7 [shape = 's32[1]{0}', space=sflag, size = 0x4, scoped, tag = 'scoped memory for tpu_custom_call.1']
    %11 = vsyncpa [#allocation3], 0
    %12 = vsyncpa [#allocation4], 0
    %13 = vsyncpa [#allocation7], 0
    // Predicated region
    $region2: #{tpu_custom_call.1} parent=1 // pred_check
      _
    $region3: #{tpu_custom_call.1} parent=1 // pred_check_branch
      %15 = sbr.rel (0) target = $region5
    $region4: #{tpu_custom_call.1} parent=1 // pred_region
      %s17 = ssub.s32 128, 128
      %18 = vsyncadd [#allocation3], %s17
      %s19 = sshll.u32 [#allocation2], 4
      %s20 = int_to_ptr.vmem [resolvable:$true] %s19
      %25 = dma.hbm_to_vmem [thread:$0]  %s0, 128, %s20, [#allocation3], 64, 64, 4
    $region5: #{tpu_custom_call.1} parent=1 // pred_fallthru
      _
    // Predicated region
    $region6: #{tpu_custom_call.1} parent=1 // pred_check
      _
    $region7: #{tpu_custom_call.1} parent=1 // pred_check_branch
      %27 = sbr.rel (0) target = $region9
    $region8: #{tpu_custom_call.1} parent=1 // pred_region
      _
    $region9: #{tpu_custom_call.1} parent=1 // pred_fallthru
      _
    // Predicated region
    $region10: #{tpu_custom_call.1} parent=1 // pred_check
      _
    $region11: #{tpu_custom_call.1} parent=1 // pred_check_branch
      %29 = sbr.rel (0) target = $region13
    $region12: #{tpu_custom_call.1} parent=1 // pred_region
      _
    $region13: #{tpu_custom_call.1} parent=1 // pred_fallthru
      _
    // Predicated region
    $region14: #{tpu_custom_call.1} parent=1 // pred_check
      _
    $region15: #{tpu_custom_call.1} parent=1 // pred_check_branch
      %31 = sbr.rel (0) target = $region17
    $region16: #{tpu_custom_call.1} parent=1 // pred_region
      _
    $region17: #{tpu_custom_call.1} parent=1 // pred_fallthru
      _
    // Predicated region
    $region18: #{tpu_custom_call.1} parent=1 // pred_check
      _
    $region19: #{tpu_custom_call.1} parent=1 // pred_check_branch
      %33 = sbr.rel (0) target = $region21
    $region20: #{tpu_custom_call.1} parent=1 // pred_region
      %34 = dma.done [#allocation3], 128
    $region21: #{tpu_custom_call.1} parent=1 // pred_fallthru
      _
    %v35 = vld [vmem:[#allocation2] sm:$0xf]
    %v36 = vld [vmem:[#allocation2 + $0x4] sm:$0xf]
    %v37 = vunpack.c.l.bf16 %v35
    %v38 = vunpack.c.l.bf16 %v36
    %v39 = vld [vmem:[%s1] sm:$0x1]
    %v40 = vld [vmem:[%s2] sm:$0x3]
    %v41 = vld [vmem:[%s3] sm:$0x3]
    %v43 = vlaneseq
    %v44 = vshrl.u32 %v43, 7
    %v45 = vsub.s32 0, %v44
    %v46 = vrot.slane %v39, %v45
    %v48 = vmul.f32 %v37, %v46
    %v49 = vmul.f32 %v38, %v46
    %vm50 = vcmask 261120
    %v51 = vsel %vm50, %v48, 0.0
    %52 = vadd.xlane.f32.xlu0 %v51
    %v53 = vpop.xlane.xlu0 %52
    %v54 = vsel %vm50, %v49, 0.0
    %55 = vadd.xlane.f32.xlu0 %v54
    %v56 = vpop.xlane.xlu0 %55
    %58 = vset.pattern.permute.xlu0 0
    %59 = vperm.xlu0 %58, %v40
    %v60 = vpop.permute.xlu0 %59
    %v61 = vlaneseq
    %v62 = vshrl.u32 %v61, 7
    %v63 = vsub.s32 0, %v62
    %v64 = vrot.slane %v60, %v63
    %v65 = vlaneseq
    %v66 = vshrl.u32 %v65, 7
    %v67 = vsub.s32 1, %v66
    %v68 = vrot.slane %v60, %v67
    %v71 = vadd.f32 %v53, %v64
    %v72 = vadd.f32 %v56, %v68
    %vm73 = vcmp.gt.f32.partialorder %v41, 0.0
    %76 = vset.pattern.permute.xlu0 0
    %77 = vperm.xlu0 %76, %v71
    %v78 = vpop.permute.xlu0 %77
    %79 = vset.pattern.permute.xlu0 0
    %80 = vperm.xlu0 %79, %v72
    %v81 = vpop.permute.xlu0 %80
    %v82 = vlaneseq
    %v83 = vand.u32 %v82, 127
    %v84 = vlaneseq
    %v85 = vshrl.u32 %v84, 7
    %v86 = vsub.s32 %v83, %v85
    %v87 = vrot.slane %v78, %v86
    %v88 = vlaneseq
    %v89 = vshrl.u32 %v88, 7
    %v90 = vsub.s32 %v83, %v89
    %v91 = vrot.slane %v81, %v90
    %vm92 = vcmask 1041409
    %v93 = vsel %vm92, %v91, %v87
    %v95 = vsel %vm73, %v93, -1e+30
    %vm96 = vcmask 58368
    %v97 = vsel %vm96, %v95, -inf
    %98 = vmax.xlane.f32.xlu0 %v97
    %v99 = vpop.xlane.xlu0 %98
    %v100 = vsub.f32 %v95, %v99
    %v101 = vmul.f32 %v100, 1.442695
    %v102 = vpow.pop %v101
    %v103 = vmul.f32 %v102, %v41
    %v104 = vsel %vm96, %v103, 0.0
    %105 = vadd.xlane.f32.xlu0 %v104
    %v106 = vpop.xlane.xlu0 %105
    %v107 = vmax.f32 %v106, 1e-30
    %v108 = vrcp.pop %v107
    %v109 = vmul.f32 %v103, %v108
    %v112 = vunpack.c.l.s4 1966171168
    %v113 = vunpack.c.0.s8 %v112
    %v114 = vlaneseq
    %v115 = vshrl.u32 %v114, 7
    %v116 = vsub.s32 %v113, %v115
    %v117 = vrot.slane %v109, %v116
    %v118 = vcombine.high %v117, %v117
    %v120 = vunpack.c.l.s4 1966171168
    %v121 = vunpack.c.0.s8 %v120
    %v122 = vlaneseq
    %v123 = vshrl.u32 %v122, 7
    %v124 = vsub.s32 %v121, %v123
    %v125 = vrot.slane %v117, %v124
    %v127 = vunpack.c.l.s4 1966171168
    %v128 = vunpack.c.0.s8 %v127
    %v129 = vlaneseq
    %v130 = vshrl.u32 %v129, 7
    %v131 = vsub.s32 %v128, %v130
    %v132 = vrot.slane %v118, %v131
    %vm133 = vcmask 64512
    %v134 = vsel %vm133, %v125, 0
    %136 = vmatprep.subr.mxu0 0.0
    %137 = vmatpush1.msra.mxu0 0.0
    %138 = vmatprep.subr.mxu0 0.0
    %139 = vmatpush1.msra.mxu0 0.0
    %140 = vmatprep.subr.mxu0 0.0
    %141 = vmatpush1.msra.mxu0 0.0
    %142 = vmatprep.subr.mxu0 0.0
    %143 = vmatpush1.msra.mxu0 0.0
    %144 = vmatprep.subr.mxu0 0.0
    %145 = vmatpush1.msra.mxu0 0.0
    %146 = vmatprep.subr.mxu0 0.0
    %147 = vmatpush1.msra.mxu0 0.0
    %148 = vmatprep.subr.mxu0 0.0
    %149 = vmatpush1.msra.mxu0 0.0
    %150 = vmatprep.subr.mxu0 0.0
    %151 = vmatpush1.msra.mxu0 0.0
    %152 = vmatprep.subr.mxu0 0.0
    %153 = vmatpush1.msra.mxu0 0.0
    %154 = vmatprep.subr.mxu0 0.0
    %155 = vmatpush1.msra.mxu0 0.0
    %156 = vmatprep.subr.mxu0 0.0
    %157 = vmatpush1.msra.mxu0 0.0
    %158 = vmatprep.subr.mxu0 0.0
    %159 = vmatpush1.msra.mxu0 0.0
    %160 = vmatprep.subr.mxu0 0.0
    %161 = vmatpush1.msra.mxu0 0.0
    %162 = vmatprep.subr.mxu0 0.0
    %163 = vmatpush1.msra.mxu0 0.0
    %164 = vmatprep.subr.mxu0 0.0
    %165 = vmatpush1.msra.mxu0 0.0
    %166 = vmatprep.subr.mxu0 0.0
    %167 = vmatpush1.msra.mxu0 %v37
    %168 = vmatprep.subr.mxu0 0.0
    %169 = vmatpush2.msra.mxu0 0.0
    %170 = vmatprep.subr.mxu0 0.0
    %171 = vmatpush2.msra.mxu0 0.0
    %172 = vmatprep.subr.mxu0 0.0
    %173 = vmatpush2.msra.mxu0 0.0
    %174 = vmatprep.subr.mxu0 0.0
    %175 = vmatpush2.msra.mxu0 0.0
    %176 = vmatprep.subr.mxu0 0.0
    %177 = vmatpush2.msra.mxu0 0.0
    %178 = vmatprep.subr.mxu0 0.0
    %179 = vmatpush2.msra.mxu0 0.0
    %180 = vmatprep.subr.mxu0 0.0
    %181 = vmatpush2.msra.mxu0 0.0
    %182 = vmatprep.subr.mxu0 0.0
    %183 = vmatpush2.msra.mxu0 0.0
    %184 = vmatprep.subr.mxu0 0.0
    %185 = vmatpush2.msra.mxu0 0.0
    %186 = vmatprep.subr.mxu0 0.0
    %187 = vmatpush2.msra.mxu0 0.0
    %188 = vmatprep.subr.mxu0 0.0
    %189 = vmatpush2.msra.mxu0 0.0
    %190 = vmatprep.subr.mxu0 0.0
    %191 = vmatpush2.msra.mxu0 0.0
    %192 = vmatprep.subr.mxu0 0.0
    %193 = vmatpush2.msra.mxu0 0.0
    %194 = vmatprep.subr.mxu0 0.0
    %195 = vmatpush2.msra.mxu0 0.0
    %196 = vmatprep.subr.mxu0 0.0
    %197 = vmatpush2.msra.mxu0 0.0
    %198 = vmatprep.subr.mxu0 0.0
    %199 = vmatpush2.msra.mxu0 0.0
    %200 = vmatprep.mubr.f32.mxu0 0.0
    %201 = vmatmul.mubr.f32.gmra.mxu0 %v134
    %v202 = vpop.f32.mrf.mxu0
    %v203 = vadd.f32 0.0, %v202
    %v204 = vpop.f32.mrf.mxu0
    %205 = vdwg.mxu0
    %v206 = vsel %vm133, %v132, 0
    %208 = vmatprep.subr.mxu0 0.0
    %209 = vmatpush1.msra.mxu0 0.0
    %210 = vmatprep.subr.mxu0 0.0
    %211 = vmatpush1.msra.mxu0 0.0
    %212 = vmatprep.subr.mxu0 0.0
    %213 = vmatpush1.msra.mxu0 0.0
    %214 = vmatprep.subr.mxu0 0.0
    %215 = vmatpush1.msra.mxu0 0.0
    %216 = vmatprep.subr.mxu0 0.0
    %217 = vmatpush1.msra.mxu0 0.0
    %218 = vmatprep.subr.mxu0 0.0
    %219 = vmatpush1.msra.mxu0 0.0
    %220 = vmatprep.subr.mxu0 0.0
    %221 = vmatpush1.msra.mxu0 0.0
    %222 = vmatprep.subr.mxu0 0.0
    %223 = vmatpush1.msra.mxu0 0.0
    %224 = vmatprep.subr.mxu0 0.0
    %225 = vmatpush1.msra.mxu0 0.0
    %226 = vmatprep.subr.mxu0 0.0
    %227 = vmatpush1.msra.mxu0 0.0
    %228 = vmatprep.subr.mxu0 0.0
    %229 = vmatpush1.msra.mxu0 0.0
    %230 = vmatprep.subr.mxu0 0.0
    %231 = vmatpush1.msra.mxu0 0.0
    %232 = vmatprep.subr.mxu0 0.0
    %233 = vmatpush1.msra.mxu0 0.0
    %234 = vmatprep.subr.mxu0 0.0
    %235 = vmatpush1.msra.mxu0 0.0
    %236 = vmatprep.subr.mxu0 0.0
    %237 = vmatpush1.msra.mxu0 0.0
    %238 = vmatprep.subr.mxu0 0.0
    %239 = vmatpush1.msra.mxu0 %v38
    %240 = vmatprep.subr.mxu0 0.0
    %241 = vmatpush2.msra.mxu0 0.0
    %242 = vmatprep.subr.mxu0 0.0
    %243 = vmatpush2.msra.mxu0 0.0
    %244 = vmatprep.subr.mxu0 0.0
    %245 = vmatpush2.msra.mxu0 0.0
    %246 = vmatprep.subr.mxu0 0.0
    %247 = vmatpush2.msra.mxu0 0.0
    %248 = vmatprep.subr.mxu0 0.0
    %249 = vmatpush2.msra.mxu0 0.0
    %250 = vmatprep.subr.mxu0 0.0
    %251 = vmatpush2.msra.mxu0 0.0
    %252 = vmatprep.subr.mxu0 0.0
    %253 = vmatpush2.msra.mxu0 0.0
    %254 = vmatprep.subr.mxu0 0.0
    %255 = vmatpush2.msra.mxu0 0.0
    %256 = vmatprep.subr.mxu0 0.0
    %257 = vmatpush2.msra.mxu0 0.0
    %258 = vmatprep.subr.mxu0 0.0
    %259 = vmatpush2.msra.mxu0 0.0
    %260 = vmatprep.subr.mxu0 0.0
    %261 = vmatpush2.msra.mxu0 0.0
    %262 = vmatprep.subr.mxu0 0.0
    %263 = vmatpush2.msra.mxu0 0.0
    %264 = vmatprep.subr.mxu0 0.0
    %265 = vmatpush2.msra.mxu0 0.0
    %266 = vmatprep.subr.mxu0 0.0
    %267 = vmatpush2.msra.mxu0 0.0
    %268 = vmatprep.subr.mxu0 0.0
    %269 = vmatpush2.msra.mxu0 0.0
    %270 = vmatprep.subr.mxu0 0.0
    %271 = vmatpush2.msra.mxu0 0.0
    %272 = vmatprep.mubr.f32.mxu0 0.0
    %273 = vmatmul.mubr.f32.gmra.mxu0 %v206
    %v274 = vpop.f32.mrf.mxu0
    %v275 = vadd.f32 0.0, %v274
    %v276 = vpop.f32.mrf.mxu0
    %277 = vdwg.mxu0
    %278 = vst.msk [vmem:[#allocation6] sm:$0x3] %vm96, %v109
    %v281 = vrot.slane %v275, 7
    %v282 = vsel %vm92, %v281, %v203
    %vm284 = vcmask 254976
    %285 = vst.msk [vmem:[#allocation5] sm:$0x3] %vm284, %v282
    // Predicated region
    $region22: #{tpu_custom_call.1} parent=1 // pred_check
      _
    $region23: #{tpu_custom_call.1} parent=1 // pred_check_branch
      %287 = sbr.rel (0) target = $region25
    $region24: #{tpu_custom_call.1} parent=1 // pred_region
      %s289 = ssub.s32 32, 32
      %290 = vsyncadd [#allocation4], %s289
      %s292 = sshll.u32 [#allocation5], 4
      %s293 = int_to_ptr.vmem [resolvable:$true] %s292
      %295 = dma.vmem_to_hbm [thread:$0]  %s293, 32, %s4, [#allocation4]
    $region25: #{tpu_custom_call.1} parent=1 // pred_fallthru
      _
    // Predicated region
    $region26: #{tpu_custom_call.1} parent=1 // pred_check
      _
    $region27: #{tpu_custom_call.1} parent=1 // pred_check_branch
      %297 = sbr.rel (0) target = $region29
    $region28: #{tpu_custom_call.1} parent=1 // pred_region
      %s299 = ssub.s32 32, 32
      %300 = vsyncadd [#allocation7], %s299
      %s302 = sshll.u32 [#allocation6], 4
      %s303 = int_to_ptr.vmem [resolvable:$true] %s302
      %305 = dma.vmem_to_hbm [thread:$0]  %s303, 32, %s5, [#allocation7]
    $region29: #{tpu_custom_call.1} parent=1 // pred_fallthru
      _
    // Predicated region
    $region30: #{tpu_custom_call.1} parent=1 // pred_check
      _
    $region31: #{tpu_custom_call.1} parent=1 // pred_check_branch
      %307 = sbr.rel (0) target = $region33
    $region32: #{tpu_custom_call.1} parent=1 // pred_region
      %308 = dma.done [#allocation4], 32
    $region33: #{tpu_custom_call.1} parent=1 // pred_fallthru
      _
    // Predicated region
    $region34: #{tpu_custom_call.1} parent=1 // pred_check
      _
    $region35: #{tpu_custom_call.1} parent=1 // pred_check_branch
      %310 = sbr.rel (0) target = $region37
    $region36: #{tpu_custom_call.1} parent=1 // pred_region
      %311 = dma.done [#allocation7], 32
    $region37: #{tpu_custom_call.1} parent=1 // pred_fallthru
      _
    %312 = vsyncpa [#allocation3], 1
    %313 = vsyncpa [#allocation4], 1
    %314 = vsyncpa [#allocation7], 1

</llo_original>
